<compile_context>
chip_gen: v5e
topology: v5e:2x2
jax: 0.10.0
libtpu: 0.0.40
codegen_flags: <defaults>
</compile_context>

<pallas_src>
import functools

import jax
import jax.numpy as jnp
from jax import lax
from jax.experimental import pallas as pl
from jax.experimental.pallas import tpu as pltpu


def _round_up(x: int, m: int) -> int:
    return ((x + m - 1) // m) * m


def _bump_kernel(xt_ref, a_ref, b_ref, k_ref, m_ref, y_ref):
    # xt_ref: (D, TM)  sample tile, samples on the lane axis
    # a_ref : (B, D)   1 / w^2                 (transposed)
    # b_ref : (B, D)   -2 * c / w^2            (transposed)
    # k_ref : (B, 1)   sum_d c^2 / w^2
    # m_ref : (B, 1)   bump magnitudes
    # y_ref : (1, TM)  per-sample output tile (lane dense)
    xt = xt_ref[...]
    a = a_ref[...]
    b = b_ref[...]
    n_bumps, n_dims = a.shape
    tm = xt.shape[1]

    if n_dims <= 8:
        # Tiny contraction: dense (B, TM) VPU FMAs beat a >90%-padded MXU
        # matmul and stay exact f32.
        dist_sq = jnp.broadcast_to(k_ref[...], (n_bumps, tm))
        for d in range(n_dims):                        # small static unroll
            xd = xt[d:d + 1, :]                        # (1, TM)
            dist_sq = dist_sq + (a[:, d:d + 1] * xd + b[:, d:d + 1]) * xd
    else:
        # Larger contraction: push the D-reduction onto the MXU.
        dist_sq = (
            jnp.dot(a, xt * xt, preferred_element_type=jnp.float32,
                    precision=lax.Precision.HIGHEST)
            + jnp.dot(b, xt, preferred_element_type=jnp.float32,
                      precision=lax.Precision.HIGHEST)
            + k_ref[...]
        )                                              # (B, TM)

    p = jnp.exp(-dist_sq)                              # (B, TM), EUP, lane dense
    # Weighted sum over bumps: bumps live on the sublane axis here, so this is
    # a dense VPU multiply + cheap sublane reduction producing the (1, TM)
    # lane-dense result directly (no relayout before the store).
    y = jnp.sum(m_ref[...] * p, axis=0, keepdims=True)
    y_ref[...] = y.astype(y_ref.dtype)


def _est_vmem_bytes(tm: int, n_dims: int, n_bumps: int) -> int:
    # Rough per-step VMEM footprint (double-buffered I/O + f32 intermediates).
    d_pad = _round_up(max(n_dims, 1), 8)
    b_pad = _round_up(max(n_bumps, 1), 8)
    x_tile = 2 * d_pad * tm * 4                        # x.T tile, double buffered
    y_tile = 2 * 8 * tm * 4                            # (1, tm) output tile, dbl buffered
    params = (2 * 2 * b_pad * _round_up(max(n_dims, 1), 128) * 4
              + 2 * 2 * b_pad * 128 * 4)               # a, b, k, m (lane padded)
    inter = 4 * b_pad * tm * 4                         # dist_sq / exp / sum temporaries
    return x_tile + y_tile + params + inter


def _choose_tile(n_smps: int, n_dims: int, n_bumps: int, tile_m: int) -> int:
    n_pad128 = _round_up(max(n_smps, 1), 128)
    tm = max(128, min(_round_up(tile_m, 128), n_pad128))
    # Keep the per-step f32 working set well inside VMEM (v7x has only 64 MiB).
    # TODO(synk): for extremely large n_bumps a second 'arbitrary' grid axis
    # over bumps with a VMEM accumulator would be needed instead of shrinking tm.
    while tm > 128 and _est_vmem_bytes(tm, n_dims, n_bumps) > (32 << 20):
        tm = max(128, _round_up(tm // 2, 128))
    # Prefer >= 2 grid steps so both v7x TensorCores get fed via the parallel axis.
    if n_pad128 // tm < 2 and n_pad128 >= 256:
        tm = max(128, _round_up((n_pad128 + 1) // 2, 128))
    return tm


@functools.partial(jax.jit, static_argnames=("tile_m",))
def sum_of_bump_fcns(x, c, w, m, *, tile_m=2048):
    """Pallas TPU implementation of SumOfBumpFcns.forward.

    Args:
      x: (n_smps, n_dims)
      c: (n_dims, n_bumps) bump centers
      w: (n_dims, n_bumps) bump widths
      m: (n_bumps,)        bump magnitudes
    Returns:
      y: (n_smps,), y[s] = sum_b m[b] * exp(-sum_d ((x[s,d]-c[d,b])/w[d,b])^2)
    """
    n_smps, n_dims = x.shape
    n_bumps = c.shape[1]
    out_dtype = x.dtype

    xf = x.astype(jnp.float32)
    cf = c.astype(jnp.float32)
    wf = w.astype(jnp.float32)
    mf = m.astype(jnp.float32)

    # One-time parameter precompute (hoists every divide out of the hot path).
    inv_w2 = 1.0 / (wf * wf)                               # (D, B)
    a_t = inv_w2.T                                         # (B, D)
    b_t = (-2.0 * cf * inv_w2).T                           # (B, D)
    k = jnp.sum(cf * cf * inv_w2, axis=0)[:, None]         # (B, 1)
    m_col = mf.reshape(n_bumps, 1)                         # (B, 1)

    tm = _choose_tile(n_smps, n_dims, n_bumps, tile_m)
    padded = _round_up(n_smps, tm)
    grid = padded // tm
    if padded != n_smps:
        xf = jnp.pad(xf, ((0, padded - n_smps), (0, 0)))
    # Layout plumbing: put samples on the lane axis for the kernel.
    xt = xf.T                                              # (D, padded)

    vmem_limit = int(min(max(_est_vmem_bytes(tm, n_dims, n_bumps) + (8 << 20),
                             32 << 20), 48 << 20))

    out = pl.pallas_call(
        _bump_kernel,
        out_shape=jax.ShapeDtypeStruct((grid, 1, tm), jnp.float32),
        grid_spec=pltpu.PrefetchScalarGridSpec(
            num_scalar_prefetch=0,
            grid=(grid,),
            in_specs=[
                pl.BlockSpec((n_dims, tm), lambda i: (0, i)),
                pl.BlockSpec((n_bumps, n_dims), lambda i: (0, 0)),
                pl.BlockSpec((n_bumps, n_dims), lambda i: (0, 0)),
                pl.BlockSpec((n_bumps, 1), lambda i: (0, 0)),
                pl.BlockSpec((n_bumps, 1), lambda i: (0, 0)),
            ],
            out_specs=pl.BlockSpec((None, 1, tm), lambda i: (i, 0, 0)),
        ),
        compiler_params=pltpu.CompilerParams(
            dimension_semantics=("parallel",),
            vmem_limit_bytes=vmem_limit,
        ),
    )(xt, a_t, b_t, k, m_col)

    y = out.reshape(padded)[:n_smps]
    return y.astype(out_dtype)


def _reference(x, c, w, m):
    # Pure-JAX mirror of the PyTorch forward.
    xe = x[:, :, None]                                              # (S, D, 1)
    dist_sq = jnp.sum(((xe - c[None]) / w[None]) ** 2, axis=1)      # (S, B)
    return jnp.sum(m * jnp.exp(-dist_sq), axis=1)                   # (S,)


# TODO(synk): bound() and pert_grads() are training-time parameter mutations
# (simple clamps / no-ops on the torch module), not part of the forward hot
# path; they are not implemented as kernels.


if __name__ == "__main__":
    key = jax.random.PRNGKey(0)

    def _run_case(case_key, n_smps, n_dims, n_bumps):
        kx, kc, kw, km = jax.random.split(case_key, 4)
        x = jax.random.normal(kx, (n_smps, n_dims), dtype=jnp.float32)
        c = jax.random.uniform(kc, (n_dims, n_bumps), minval=-1.0, maxval=1.0,
                               dtype=jnp.float32)
        w = jax.random.uniform(kw, (n_dims, n_bumps), minval=0.5, maxval=1.5,
                               dtype=jnp.float32)
        m = jax.random.normal(km, (n_bumps,), dtype=jnp.float32)

        y = sum_of_bump_fcns(x, c, w, m)
        jax.block_until_ready(y)

        y_ref = _reference(x, c, w, m)
        assert y.shape == (n_smps,)
        err = float(jnp.max(jnp.abs(y - y_ref)))
        assert jnp.allclose(y, y_ref, atol=1e-4, rtol=1e-4), (
            f"mismatch vs reference (n_smps={n_smps}): max |err| = {err}")

    k1, k2 = jax.random.split(key)
    _run_case(k1, 256, 4, 16)   # aligned sample count
    _run_case(k2, 300, 4, 16)   # ragged sample count (exercises pad + slice)
    print("KERNEL_OK")
</pallas_src>

<mosaic_0001>
module attributes {stable_mosaic.version = 11 : i64} {
  func.func @_bump_kernel(%arg0: i32, %arg1: memref<4x128xf32, #tpu.memory_space<vmem>>, %arg2: memref<16x4xf32, #tpu.memory_space<vmem>>, %arg3: memref<16x4xf32, #tpu.memory_space<vmem>>, %arg4: memref<16x1xf32, #tpu.memory_space<vmem>>, %arg5: memref<16x1xf32, #tpu.memory_space<vmem>>, %arg6: memref<1x1x128xf32, #tpu.memory_space<vmem>>) attributes {dimension_semantics = [#tpu.dimension_semantics<parallel>], iteration_bounds = array<i64: 2>, scalar_prefetch = 0 : i64, scratch_operands = 0 : i64, tpu.core_type = #tpu.core_type<tc>, window_params = [{transform_indices = @transform_0, window_bounds = array<i64: 4, 128>}, {pipeline_mode = #tpu.pipeline_mode<synchronous>, transform_indices = @transform_1, window_bounds = array<i64: 16, 4>}, {pipeline_mode = #tpu.pipeline_mode<synchronous>, transform_indices = @transform_2, window_bounds = array<i64: 16, 4>}, {pipeline_mode = #tpu.pipeline_mode<synchronous>, transform_indices = @transform_3, window_bounds = array<i64: 16, 1>}, {pipeline_mode = #tpu.pipeline_mode<synchronous>, transform_indices = @transform_4, window_bounds = array<i64: 16, 1>}, {transform_indices = @transform_5, window_bounds = array<i64: 1, 1, 128>}]} {
    %c0 = arith.constant 0 : index
    %c0_0 = arith.constant 0 : index
    %0 = vector.load %arg1[%c0, %c0_0] : memref<4x128xf32, #tpu.memory_space<vmem>>, vector<4x128xf32>
    %c0_1 = arith.constant 0 : index
    %c0_2 = arith.constant 0 : index
    %1 = vector.load %arg2[%c0_1, %c0_2] : memref<16x4xf32, #tpu.memory_space<vmem>>, vector<16x4xf32>
    %c0_3 = arith.constant 0 : index
    %c0_4 = arith.constant 0 : index
    %2 = vector.load %arg3[%c0_3, %c0_4] : memref<16x4xf32, #tpu.memory_space<vmem>>, vector<16x4xf32>
    %c0_5 = arith.constant 0 : index
    %c0_6 = arith.constant 0 : index
    %3 = vector.load %arg4[%c0_5, %c0_6] : memref<16x1xf32, #tpu.memory_space<vmem>>, vector<16x1xf32>
    %4 = vector.shape_cast %3 : vector<16x1xf32> to vector<16x1xf32>
    %5 = vector.broadcast %4 : vector<16x1xf32> to vector<16x128xf32>
    %6 = vector.extract_strided_slice %0 {offsets = [0, 0], sizes = [1, 128], strides = [1, 1]} : vector<4x128xf32> to vector<1x128xf32>
    %7 = vector.extract_strided_slice %1 {offsets = [0, 0], sizes = [16, 1], strides = [1, 1]} : vector<16x4xf32> to vector<16x1xf32>
    %8 = vector.broadcast %7 : vector<16x1xf32> to vector<16x128xf32>
    %9 = vector.broadcast %6 : vector<1x128xf32> to vector<16x128xf32>
    %10 = arith.mulf %8, %9 : vector<16x128xf32>
    %11 = vector.extract_strided_slice %2 {offsets = [0, 0], sizes = [16, 1], strides = [1, 1]} : vector<16x4xf32> to vector<16x1xf32>
    %12 = vector.broadcast %11 : vector<16x1xf32> to vector<16x128xf32>
    %13 = arith.addf %10, %12 : vector<16x128xf32>
    %14 = vector.broadcast %6 : vector<1x128xf32> to vector<16x128xf32>
    %15 = arith.mulf %13, %14 : vector<16x128xf32>
    %16 = arith.addf %5, %15 : vector<16x128xf32>
    %17 = vector.extract_strided_slice %0 {offsets = [1, 0], sizes = [1, 128], strides = [1, 1]} : vector<4x128xf32> to vector<1x128xf32>
    %18 = vector.extract_strided_slice %1 {offsets = [0, 1], sizes = [16, 1], strides = [1, 1]} : vector<16x4xf32> to vector<16x1xf32>
    %19 = vector.broadcast %18 : vector<16x1xf32> to vector<16x128xf32>
    %20 = vector.broadcast %17 : vector<1x128xf32> to vector<16x128xf32>
    %21 = arith.mulf %19, %20 : vector<16x128xf32>
    %22 = vector.extract_strided_slice %2 {offsets = [0, 1], sizes = [16, 1], strides = [1, 1]} : vector<16x4xf32> to vector<16x1xf32>
    %23 = vector.broadcast %22 : vector<16x1xf32> to vector<16x128xf32>
    %24 = arith.addf %21, %23 : vector<16x128xf32>
    %25 = vector.broadcast %17 : vector<1x128xf32> to vector<16x128xf32>
    %26 = arith.mulf %24, %25 : vector<16x128xf32>
    %27 = arith.addf %16, %26 : vector<16x128xf32>
    %28 = vector.extract_strided_slice %0 {offsets = [2, 0], sizes = [1, 128], strides = [1, 1]} : vector<4x128xf32> to vector<1x128xf32>
    %29 = vector.extract_strided_slice %1 {offsets = [0, 2], sizes = [16, 1], strides = [1, 1]} : vector<16x4xf32> to vector<16x1xf32>
    %30 = vector.broadcast %29 : vector<16x1xf32> to vector<16x128xf32>
    %31 = vector.broadcast %28 : vector<1x128xf32> to vector<16x128xf32>
    %32 = arith.mulf %30, %31 : vector<16x128xf32>
    %33 = vector.extract_strided_slice %2 {offsets = [0, 2], sizes = [16, 1], strides = [1, 1]} : vector<16x4xf32> to vector<16x1xf32>
    %34 = vector.broadcast %33 : vector<16x1xf32> to vector<16x128xf32>
    %35 = arith.addf %32, %34 : vector<16x128xf32>
    %36 = vector.broadcast %28 : vector<1x128xf32> to vector<16x128xf32>
    %37 = arith.mulf %35, %36 : vector<16x128xf32>
    %38 = arith.addf %27, %37 : vector<16x128xf32>
    %39 = vector.extract_strided_slice %0 {offsets = [3, 0], sizes = [1, 128], strides = [1, 1]} : vector<4x128xf32> to vector<1x128xf32>
    %40 = vector.extract_strided_slice %1 {offsets = [0, 3], sizes = [16, 1], strides = [1, 1]} : vector<16x4xf32> to vector<16x1xf32>
    %41 = vector.broadcast %40 : vector<16x1xf32> to vector<16x128xf32>
    %42 = vector.broadcast %39 : vector<1x128xf32> to vector<16x128xf32>
    %43 = arith.mulf %41, %42 : vector<16x128xf32>
    %44 = vector.extract_strided_slice %2 {offsets = [0, 3], sizes = [16, 1], strides = [1, 1]} : vector<16x4xf32> to vector<16x1xf32>
    %45 = vector.broadcast %44 : vector<16x1xf32> to vector<16x128xf32>
    %46 = arith.addf %43, %45 : vector<16x128xf32>
    %47 = vector.broadcast %39 : vector<1x128xf32> to vector<16x128xf32>
    %48 = arith.mulf %46, %47 : vector<16x128xf32>
    %49 = arith.addf %38, %48 : vector<16x128xf32>
    %cst = arith.constant 0.000000e+00 : f32
    %50 = vector.broadcast %cst : f32 to vector<16x128xf32>
    %51 = arith.subf %50, %49 : vector<16x128xf32>
    %52 = math.exp %51 : vector<16x128xf32>
    %c0_7 = arith.constant 0 : index
    %c0_8 = arith.constant 0 : index
    %53 = vector.load %arg5[%c0_7, %c0_8] : memref<16x1xf32, #tpu.memory_space<vmem>>, vector<16x1xf32>
    %54 = vector.broadcast %53 : vector<16x1xf32> to vector<16x128xf32>
    %55 = arith.mulf %54, %52 : vector<16x128xf32>
    %cst_9 = arith.constant dense<0.000000e+00> : vector<128xf32>
    %56 = vector.multi_reduction <add>, %55, %cst_9 [0] : vector<16x128xf32> to vector<128xf32>
    %57 = vector.shape_cast %56 : vector<128xf32> to vector<1x128xf32>
    %c0_10 = arith.constant 0 : index
    %c0_11 = arith.constant 0 : index
    %c0_12 = arith.constant 0 : index
    %58 = vector.load %arg6[%c0_10, %c0_11, %c0_12] : memref<1x1x128xf32, #tpu.memory_space<vmem>>, vector<1x1x128xf32>
    %59 = vector.shape_cast %58 : vector<1x1x128xf32> to vector<1x128xf32>
    %60 = vector.shape_cast %57 : vector<1x128xf32> to vector<1x1x128xf32>
    tpu.vector_store %arg6[%c0_10, %c0_11, %c0_12], %60 {strides = array<i32>} : memref<1x1x128xf32, #tpu.memory_space<vmem>>, vector<1x1x128xf32>,
    return
  }
  func.func @transform_0(%arg0: i32) -> (i32, i32) {
    %c0_i32 = arith.constant 0 : i32
    %c0_i32_0 = arith.constant 0 : i32
    return %c0_i32, %arg0 : i32, i32
  }
  func.func @transform_1(%arg0: i32) -> (i32, i32) {
    %c0_i32 = arith.constant 0 : i32
    %c0_i32_0 = arith.constant 0 : i32
    %c0_i32_1 = arith.constant 0 : i32
    return %c0_i32, %c0_i32_0 : i32, i32
  }
  func.func @transform_2(%arg0: i32) -> (i32, i32) {
    %c0_i32 = arith.constant 0 : i32
    %c0_i32_0 = arith.constant 0 : i32
    %c0_i32_1 = arith.constant 0 : i32
    return %c0_i32, %c0_i32_0 : i32, i32
  }
  func.func @transform_3(%arg0: i32) -> (i32, i32) {
    %c0_i32 = arith.constant 0 : i32
    %c0_i32_0 = arith.constant 0 : i32
    %c0_i32_1 = arith.constant 0 : i32
    return %c0_i32, %c0_i32_0 : i32, i32
  }
  func.func @transform_4(%arg0: i32) -> (i32, i32) {
    %c0_i32 = arith.constant 0 : i32
    %c0_i32_0 = arith.constant 0 : i32
    %c0_i32_1 = arith.constant 0 : i32
    return %c0_i32, %c0_i32_0 : i32, i32
  }
  func.func @transform_5(%arg0: i32) -> (i32, i32, i32) {
    %c0_i32 = arith.constant 0 : i32
    %c0_i32_0 = arith.constant 0 : i32
    %c0_i32_1 = arith.constant 0 : i32
    return %arg0, %c0_i32, %c0_i32_0 : i32, i32, i32
  }
}

</mosaic_0001>

<llo_original>
// kernel: sum_of_bump_fcns.1
$region0: #{sum_of_bump_fcns.1}
  #allocation0 [shape = 'u32[]', space=smem, size = 0x4, offset = 0x4, fixed_abs, tag = 'smem constant byte address 0x4 - core index']
  #allocation1 [shape = 'u32[72,128]{1,0:T(1,128)}', space=vmem, size = 0x9000, scoped, tag = 'internal scratch']
  %s0 = inlined_call_operand.vmem [shape: f32[4,256], index: 0, kind: input, shape index: {}]
  %s1 = inlined_call_operand.vmem [shape: f32[16,4], index: 1, kind: input, shape index: {}]
  %s2 = inlined_call_operand.vmem [shape: f32[16,4], index: 2, kind: input, shape index: {}]
  %s3 = inlined_call_operand.vmem [shape: f32[16,1], index: 3, kind: input, shape index: {}]
  %s4 = inlined_call_operand.vmem [shape: f32[16,1], index: 4, kind: input, shape index: {}]
  %s5 = inlined_call_operand.hbm [shape: f32[2,1,128], index: 5, kind: output, shape index: {}]
  %s6 = sld [smem:[#allocation0]]
  $region53: #{sum_of_bump_fcns.1} parent=0
    _
  %s8 = ssub.s32 1, %s6
  %s9 = scalar_select 0, %s8, %s6
  $region1: #{sum_of_bump_fcns.1} parent=0
    #allocation2 [shape = 'u8[1024]{0}', space=vmem, size = 0x400, scoped, tag = 'output window, operand 0']
    #allocation3 [shape = 's32[2]{0}', space=sflag, size = 0x8, scoped, tag = 'scoped memory for sum_of_bump_fcns.1']
    %10 = vsyncpa [#allocation3], 0
    %s11 = scalar_lea.sflag [#allocation3], 1
    %12 = vsyncpa %s11, 0
    loop: start=0, step=1, limit=4
    $region2: #{sum_of_bump_fcns.1} parent=1 // loop_pre_header
      _
    $region3: #{sum_of_bump_fcns.1} parent=1 // loop_header
      %s14 = sphi 0, %s18
      %p15 = scmp.ge.s32.totalorder %s14, 4
      %s24 = sphi 0, %s26
      %s27 = sphi 0, %s24
      %s28 = sphi 0, %s27
      %s44 = sphi 0, %s28
      %s48 = sphi 0, %s48
      %s50 = sphi 0, %s48
      %s51 = sphi 0, %s50
      %s65 = sphi 0, %s51
      %s69 = sphi 0, %s69
      %s71 = sphi 0, %s69
      %s72 = sphi 0, %s71
      %s86 = sphi 0, %s72
      %s90 = sphi 0, %s90
      %s92 = sphi 0, %s90
      %s93 = sphi 0, %s92
      %s107 = sphi 0, %s93
      %s111 = sphi 0, %s111
      %s113 = sphi 0, %s111
      %s114 = sphi 0, %s113
      %s128 = sphi 0, %s114
      %s134 = sphi 0, %s136
      %s137 = sphi 0, %s134
      %s138 = sphi 0, %s137
      %s154 = sphi 0, %s138
    $region4: #{sum_of_bump_fcns.1} parent=1 // loop_header_branch
      %17 = sbr.rel (%p15) target = $region8
    $region5: #{sum_of_bump_fcns.1} parent=1 // loop_body
      %s19 = ssub.s32 %s14, 1
      %s20 = ssub.s32 %s14, 2
      %s21 = sadd.s32 %s14, 1
      %s22 = ssub.s32 %s14, %s21
      %p23 = scmp.eq.s32.totalorder %s22, 0
      %s25 = sadd.s32 %s24, 1
      %s26 = scalar_select %p23, %s24, %s25
      %p29 = pneg %p23
      %p30 = scmp.eq.s32.totalorder %s14, 1
      %p31 = por %p29, %p30
      %p32 = scmp.ne.s32.totalorder %s24, %s27
      %p33 = scmp.eq.s32.totalorder %s14, 0
      %p34 = por %p32, %p33
      %p35 = scmp.ne.s32.totalorder %s24, %s27
      %p36 = scmp.eq.s32.totalorder %s19, 1
      %p37 = por %p35, %p36
      %p38 = scmp.ne.s32.totalorder %s27, %s28
      %p39 = scmp.eq.s32.totalorder %s19, 0
      %p40 = por %p38, %p39
      %p41 = scmp.ne.s32.totalorder %s27, %s28
      %p42 = scmp.eq.s32.totalorder %s20, 1
      %p43 = por %p41, %p42
      %p45 = scmp.ne.s32.totalorder %s28, %s44
      %p46 = scmp.eq.s32.totalorder %s20, 0
      %p47 = por %p45, %p46
      %s49 = sadd.s32 %s48, 1
      %p52 = scmp.eq.s32.totalorder %s14, 1
      %p53 = scmp.ne.s32.totalorder %s48, %s50
      %p54 = scmp.eq.s32.totalorder %s14, 0
      %p55 = por %p53, %p54
      %p56 = scmp.ne.s32.totalorder %s48, %s50
      %p57 = scmp.eq.s32.totalorder %s19, 1
      %p58 = por %p56, %p57
      %p59 = scmp.ne.s32.totalorder %s50, %s51
      %p60 = scmp.eq.s32.totalorder %s19, 0
      %p61 = por %p59, %p60
      %p62 = scmp.ne.s32.totalorder %s50, %s51
      %p63 = scmp.eq.s32.totalorder %s20, 1
      %p64 = por %p62, %p63
      %p66 = scmp.ne.s32.totalorder %s51, %s65
      %p67 = scmp.eq.s32.totalorder %s20, 0
      %p68 = por %p66, %p67
      %s70 = sadd.s32 %s69, 1
      %p73 = scmp.eq.s32.totalorder %s14, 1
      %p74 = scmp.ne.s32.totalorder %s69, %s71
      %p75 = scmp.eq.s32.totalorder %s14, 0
      %p76 = por %p74, %p75
      %p77 = scmp.ne.s32.totalorder %s69, %s71
      %p78 = scmp.eq.s32.totalorder %s19, 1
      %p79 = por %p77, %p78
      %p80 = scmp.ne.s32.totalorder %s71, %s72
      %p81 = scmp.eq.s32.totalorder %s19, 0
      %p82 = por %p80, %p81
      %p83 = scmp.ne.s32.totalorder %s71, %s72
      %p84 = scmp.eq.s32.totalorder %s20, 1
      %p85 = por %p83, %p84
      %p87 = scmp.ne.s32.totalorder %s72, %s86
      %p88 = scmp.eq.s32.totalorder %s20, 0
      %p89 = por %p87, %p88
      %s91 = sadd.s32 %s90, 1
      %p94 = scmp.eq.s32.totalorder %s14, 1
      %p95 = scmp.ne.s32.totalorder %s90, %s92
      %p96 = scmp.eq.s32.totalorder %s14, 0
      %p97 = por %p95, %p96
      %p98 = scmp.ne.s32.totalorder %s90, %s92
      %p99 = scmp.eq.s32.totalorder %s19, 1
      %p100 = por %p98, %p99
      %p101 = scmp.ne.s32.totalorder %s92, %s93
      %p102 = scmp.eq.s32.totalorder %s19, 0
      %p103 = por %p101, %p102
      %p104 = scmp.ne.s32.totalorder %s92, %s93
      %p105 = scmp.eq.s32.totalorder %s20, 1
      %p106 = por %p104, %p105
      %p108 = scmp.ne.s32.totalorder %s93, %s107
      %p109 = scmp.eq.s32.totalorder %s20, 0
      %p110 = por %p108, %p109
      %s112 = sadd.s32 %s111, 1
      %p115 = scmp.eq.s32.totalorder %s14, 1
      %p116 = scmp.ne.s32.totalorder %s111, %s113
      %p117 = scmp.eq.s32.totalorder %s14, 0
      %p118 = por %p116, %p117
      %p119 = scmp.ne.s32.totalorder %s111, %s113
      %p120 = scmp.eq.s32.totalorder %s19, 1
      %p121 = por %p119, %p120
      %p122 = scmp.ne.s32.totalorder %s113, %s114
      %p123 = scmp.eq.s32.totalorder %s19, 0
      %p124 = por %p122, %p123
      %p125 = scmp.ne.s32.totalorder %s113, %s114
      %p126 = scmp.eq.s32.totalorder %s20, 1
      %p127 = por %p125, %p126
      %p129 = scmp.ne.s32.totalorder %s114, %s128
      %p130 = scmp.eq.s32.totalorder %s20, 0
      %p131 = por %p129, %p130
      %s132 = ssub.s32 %s14, %s21
      %p133 = scmp.eq.s32.totalorder %s132, 0
      %s135 = sadd.s32 %s134, 1
      %s136 = scalar_select %p133, %s134, %s135
      %p139 = pneg %p133
      %p140 = scmp.eq.s32.totalorder %s14, 1
      %p141 = por %p139, %p140
      %p142 = scmp.ne.s32.totalorder %s134, %s137
      %p143 = scmp.eq.s32.totalorder %s14, 0
      %p144 = por %p142, %p143
      %p145 = scmp.ne.s32.totalorder %s134, %s137
      %p146 = scmp.eq.s32.totalorder %s19, 1
      %p147 = por %p145, %p146
      %p148 = scmp.ne.s32.totalorder %s137, %s138
      %p149 = scmp.eq.s32.totalorder %s19, 0
      %p150 = por %p148, %p149
      %p151 = scmp.ne.s32.totalorder %s137, %s138
      %p152 = scmp.eq.s32.totalorder %s20, 1
      %p153 = por %p151, %p152
      %p155 = scmp.ne.s32.totalorder %s138, %s154
      %p156 = scmp.eq.s32.totalorder %s20, 0
      %p157 = por %p155, %p156
      %p158 = scmp.le.s32.totalorder 1, %s14
      %p159 = scmp.lt.s32.totalorder %s14, 3
      %p160 = pnand %p158, %p159
      %p161 = pneg %p160
      // Predicated region
      $region9: #{sum_of_bump_fcns.1} parent=5 // pred_check
        _
      $region10: #{sum_of_bump_fcns.1} parent=5 // pred_check_branch
        %163 = sbr.rel (%p160) target = $region12
      $region11: #{sum_of_bump_fcns.1} parent=5 // pred_region
        %s164 = ssub.s32 %s14, 1
        // Predicated region
        $region13: #{sum_of_bump_fcns.1} parent=11 // pred_check
          %p165 = pneg %p61
        $region14: #{sum_of_bump_fcns.1} parent=11 // pred_check_branch
          %167 = sbr.rel (%p165) target = $region16
        $region15: #{sum_of_bump_fcns.1} parent=11 // pred_region
          _
        $region16: #{sum_of_bump_fcns.1} parent=11 // pred_fallthru
          _
        // Predicated region
        $region17: #{sum_of_bump_fcns.1} parent=11 // pred_check
          %p168 = pneg %p82
        $region18: #{sum_of_bump_fcns.1} parent=11 // pred_check_branch
          %170 = sbr.rel (%p168) target = $region20
        $region19: #{sum_of_bump_fcns.1} parent=11 // pred_region
          _
        $region20: #{sum_of_bump_fcns.1} parent=11 // pred_fallthru
          _
        // Predicated region
        $region21: #{sum_of_bump_fcns.1} parent=11 // pred_check
          %p171 = pneg %p103
        $region22: #{sum_of_bump_fcns.1} parent=11 // pred_check_branch
          %173 = sbr.rel (%p171) target = $region24
        $region23: #{sum_of_bump_fcns.1} parent=11 // pred_region
          _
        $region24: #{sum_of_bump_fcns.1} parent=11 // pred_fallthru
          _
        // Predicated region
        $region25: #{sum_of_bump_fcns.1} parent=11 // pred_check
          %p174 = pneg %p124
        $region26: #{sum_of_bump_fcns.1} parent=11 // pred_check_branch
          %176 = sbr.rel (%p174) target = $region28
        $region27: #{sum_of_bump_fcns.1} parent=11 // pred_region
          _
        $region28: #{sum_of_bump_fcns.1} parent=11 // pred_fallthru
          _
      $region12: #{sum_of_bump_fcns.1} parent=5 // pred_fallthru
        _
      %p177 = scmp.lt.s32.totalorder %s14, 2
      // Predicated region
      $region29: #{sum_of_bump_fcns.1} parent=5 // pred_check
        %p178 = pneg %p177
      $region30: #{sum_of_bump_fcns.1} parent=5 // pred_check_branch
        %180 = sbr.rel (%p178) target = $region32
      $region31: #{sum_of_bump_fcns.1} parent=5 // pred_region
        // Predicated region
        $region33: #{sum_of_bump_fcns.1} parent=31 // pred_check
          %p181 = pneg %p34
        $region34: #{sum_of_bump_fcns.1} parent=31 // pred_check_branch
          %183 = sbr.rel (%p181) target = $region36
        $region35: #{sum_of_bump_fcns.1} parent=31 // pred_region
          %p184 = scmp.lt.s32.totalorder %s14, 1
          %s185 = scalar_select %p184, %s14, 1
          %s186 = smul.addr %s185, 4
          %s187 = scalar_lea.vmem %s0, %s186
        $region36: #{sum_of_bump_fcns.1} parent=31 // pred_fallthru
          _
      $region32: #{sum_of_bump_fcns.1} parent=5 // pred_fallthru
        _
      %p188 = scmp.le.s32.totalorder 1, %s14
      %p189 = scmp.lt.s32.totalorder %s14, 3
      %p190 = pnand %p188, %p189
      %p191 = pneg %p190
      // Predicated region
      $region37: #{sum_of_bump_fcns.1} parent=5 // pred_check
        _
      $region38: #{sum_of_bump_fcns.1} parent=5 // pred_check_branch
        %193 = sbr.rel (%p190) target = $region40
      $region39: #{sum_of_bump_fcns.1} parent=5 // pred_region
        %s194 = ssub.s32 %s14, 1
        %p195 = scmp.lt.s32.totalorder %s19, 1
        %s196 = scalar_select %p195, %s19, 1
        %s197 = smul.addr %s196, 4
        %s198 = scalar_lea.vmem %s0, %s197
        %p199 = pneg %p40
        %p200 = pneg %p37
        %p201 = pneg %p61
        %p202 = pneg %p58
        %p203 = pneg %p82
        %p204 = pneg %p79
        %p205 = pneg %p103
        %p206 = pneg %p100
        %p207 = pneg %p124
        %p208 = pneg %p121
        %p209 = pneg %p150
        %p210 = pneg %p147
        %s211 = sand.u32 %s137, 1
        %s212 = scalar_lea.sflag [#allocation3], %s211
        %s213 = sand.u32 %s137, 1
        %s214 = scalar_lea.vmem [#allocation2], %s213
        %p215 = scmp.lt.s32.totalorder %s19, 1
        %s216 = scalar_select %p215, %s19, 1
        %s217 = smul.addr %s216, 4
        %s218 = scalar_lea.vmem %s0, %s217
        %v219 = vld [vmem:[%s218] sm:$0xf]
        %v220 = vld [vmem:[%s1] sm:$0xff]
        %v221 = vld [vmem:[%s1 + $0x8] sm:$0xff]
        %v222 = vld [vmem:[%s2] sm:$0xff]
        %v223 = vld [vmem:[%s2 + $0x8] sm:$0xff]
        %v224 = vld [vmem:[%s3] sm:$0xff]
        %v225 = vld [vmem:[%s3 + $0x8] sm:$0xff]
        %227 = vset.pattern.permute.xlu0 0
        %228 = vperm.xlu0 %227, %v224
        %v229 = vpop.permute.xlu0 %228
        %232 = vset.pattern.permute.xlu0 0
        %233 = vperm.xlu0 %232, %v225
        %v234 = vpop.permute.xlu0 %233
        %237 = vset.pattern.permute.xlu0 0
        %238 = vperm.xlu0 %237, %v220
        %v239 = vpop.permute.xlu0 %238
        %242 = vset.pattern.permute.xlu0 0
        %243 = vperm.xlu0 %242, %v221
        %v244 = vpop.permute.xlu0 %243
        %v246 = vperm.slane %v219, 0
        %v247 = vmul.f32 %v239, %v246
        %v248 = vmul.f32 %v244, %v246
        %250 = vset.pattern.permute.xlu0 0
        %251 = vperm.xlu0 %250, %v222
        %v252 = vpop.permute.xlu0 %251
        %255 = vset.pattern.permute.xlu0 0
        %256 = vperm.xlu0 %255, %v223
        %v257 = vpop.permute.xlu0 %256
        %v259 = vadd.f32 %v247, %v252
        %v260 = vadd.f32 %v248, %v257
        %v261 = vmul.f32 %v259, %v246
        %v262 = vmul.f32 %v260, %v246
        %v263 = vadd.f32 %v229, %v261
        %v264 = vadd.f32 %v234, %v262
        %265 = vset.pattern.permute.xlu0 1
        %266 = vperm.xlu0 %265, %v220
        %v267 = vpop.permute.xlu0 %266
        %269 = vset.pattern.permute.xlu0 1
        %270 = vperm.xlu0 %269, %v221
        %v271 = vpop.permute.xlu0 %270
        %v273 = vperm.slane %v219, 1
        %v274 = vmul.f32 %v267, %v273
        %v275 = vmul.f32 %v271, %v273
        %276 = vset.pattern.permute.xlu0 1
        %277 = vperm.xlu0 %276, %v222
        %v278 = vpop.permute.xlu0 %277
        %280 = vset.pattern.permute.xlu0 1
        %281 = vperm.xlu0 %280, %v223
        %v282 = vpop.permute.xlu0 %281
        %v284 = vadd.f32 %v274, %v278
        %v285 = vadd.f32 %v275, %v282
        %v286 = vmul.f32 %v284, %v273
        %v287 = vmul.f32 %v285, %v273
        %v288 = vadd.f32 %v263, %v286
        %v289 = vadd.f32 %v264, %v287
        %290 = vset.pattern.permute.xlu0 2
        %291 = vperm.xlu0 %290, %v220
        %v292 = vpop.permute.xlu0 %291
        %294 = vset.pattern.permute.xlu0 2
        %295 = vperm.xlu0 %294, %v221
        %v296 = vpop.permute.xlu0 %295
        %v298 = vperm.slane %v219, 2
        %v299 = vmul.f32 %v292, %v298
        %v300 = vmul.f32 %v296, %v298
        %301 = vset.pattern.permute.xlu0 2
        %302 = vperm.xlu0 %301, %v222
        %v303 = vpop.permute.xlu0 %302
        %305 = vset.pattern.permute.xlu0 2
        %306 = vperm.xlu0 %305, %v223
        %v307 = vpop.permute.xlu0 %306
        %v309 = vadd.f32 %v299, %v303
        %v310 = vadd.f32 %v300, %v307
        %v311 = vmul.f32 %v309, %v298
        %v312 = vmul.f32 %v310, %v298
        %v313 = vadd.f32 %v288, %v311
        %v314 = vadd.f32 %v289, %v312
        %315 = vset.pattern.permute.xlu0 3
        %316 = vperm.xlu0 %315, %v220
        %v317 = vpop.permute.xlu0 %316
        %319 = vset.pattern.permute.xlu0 3
        %320 = vperm.xlu0 %319, %v221
        %v321 = vpop.permute.xlu0 %320
        %v323 = vperm.slane %v219, 3
        %v324 = vmul.f32 %v317, %v323
        %v325 = vmul.f32 %v321, %v323
        %326 = vset.pattern.permute.xlu0 3
        %327 = vperm.xlu0 %326, %v222
        %v328 = vpop.permute.xlu0 %327
        %330 = vset.pattern.permute.xlu0 3
        %331 = vperm.xlu0 %330, %v223
        %v332 = vpop.permute.xlu0 %331
        %v334 = vadd.f32 %v324, %v328
        %v335 = vadd.f32 %v325, %v332
        %v336 = vmul.f32 %v334, %v323
        %v337 = vmul.f32 %v335, %v323
        %v338 = vadd.f32 %v313, %v336
        %v339 = vadd.f32 %v314, %v337
        %v340 = vsub.f32 0.0, %v338
        %v341 = vsub.f32 0.0, %v339
        %v342 = vmul.f32 %v340, 1.442695
        %v343 = vpow.pop %v342
        %v344 = vmul.f32 %v341, 1.442695
        %v345 = vpow.pop %v344
        %v346 = vld [vmem:[%s4] sm:$0xff]
        %v347 = vld [vmem:[%s4 + $0x8] sm:$0xff]
        %349 = vset.pattern.permute.xlu0 0
        %350 = vperm.xlu0 %349, %v346
        %v351 = vpop.permute.xlu0 %350
        %354 = vset.pattern.permute.xlu0 0
        %355 = vperm.xlu0 %354, %v347
        %v356 = vpop.permute.xlu0 %355
        %v358 = vmul.f32 %v351, %v343
        %v359 = vmul.f32 %v356, %v345
        %v360 = vadd.f32 %v358, %v359
        %v361 = vrot.slane %v360, 4
        %v362 = vadd.f32 %v360, %v361
        %v363 = vrot.slane %v362, 2
        %v364 = vadd.f32 %v362, %v363
        %v365 = vrot.slane %v364, 1
        %v366 = vadd.f32 %v364, %v365
        %367 = vst [vmem:[%s214] sm:$0x1] %v366
        %s368 = sand.u32 %s137, 1
        %s369 = scalar_lea.sflag [#allocation3], %s368
        %s370 = sand.u32 %s137, 1
        %s371 = scalar_lea.vmem [#allocation2], %s370
        // Predicated region
        $region41: #{sum_of_bump_fcns.1} parent=39 // pred_check
          %p372 = pneg %p147
        $region42: #{sum_of_bump_fcns.1} parent=39 // pred_check_branch
          %374 = sbr.rel (%p372) target = $region44
        $region43: #{sum_of_bump_fcns.1} parent=39 // pred_region
          %376 = vsyncadd %s369, 0
          %s377 = scalar_lea.hbm %s5, %s19
          %s379 = sshll.u32 %s371, 4
          %s380 = int_to_ptr.vmem [resolvable:$true] %s379
          %s381 = sshll.u32 %s377, 4
          %s382 = int_to_ptr.hbm [resolvable:$true] %s381
          %384 = dma.vmem_to_hbm [thread:$0]  %s380, 16, %s382, %s369
        $region44: #{sum_of_bump_fcns.1} parent=39 // pred_fallthru
          _
      $region40: #{sum_of_bump_fcns.1} parent=5 // pred_fallthru
        _
      %p385 = scmp.le.s32.totalorder 2, %s14
      // Predicated region
      $region45: #{sum_of_bump_fcns.1} parent=5 // pred_check
        %p386 = pneg %p385
      $region46: #{sum_of_bump_fcns.1} parent=5 // pred_check_branch
        %388 = sbr.rel (%p386) target = $region48
      $region47: #{sum_of_bump_fcns.1} parent=5 // pred_region
        %s389 = ssub.s32 %s14, 2
        // Predicated region
        $region49: #{sum_of_bump_fcns.1} parent=47 // pred_check
          %p390 = pneg %p153
        $region50: #{sum_of_bump_fcns.1} parent=47 // pred_check_branch
          %392 = sbr.rel (%p390) target = $region52
        $region51: #{sum_of_bump_fcns.1} parent=47 // pred_region
          %s393 = sand.u32 %s138, 1
          %s394 = scalar_lea.sflag [#allocation3], %s393
          %s395 = sand.u32 %s138, 1
          %s396 = scalar_lea.vmem [#allocation2], %s395
          %398 = dma.done %s394, 16
        $region52: #{sum_of_bump_fcns.1} parent=47 // pred_fallthru
          _
      $region48: #{sum_of_bump_fcns.1} parent=5 // pred_fallthru
        _
    $region6: #{sum_of_bump_fcns.1} parent=1 // loop_footer
      %s18 = sadd.s32 1, %s14
    $region7: #{sum_of_bump_fcns.1} parent=1 // loop_footer_branch
      %13 = sbr.rel target = $region3
    $region8: #{sum_of_bump_fcns.1} parent=1 // loop_exit
      _
    %399 = vsyncpa [#allocation3], 1
    %s400 = scalar_lea.sflag [#allocation3], 1
    %401 = vsyncpa %s400, 1

</llo_original>
